<compile_context>
chip_gen: v6e
topology: v6e:2x2x1
jax: 0.10.0
libtpu: 0.0.40
codegen_flags: <defaults>
</compile_context>

<pallas_src>
import functools

import jax
import jax.numpy as jnp
from jax.experimental import pallas as pl
from jax.experimental.pallas import tpu as pltpu

EPS = 1e-9


def _cln_kernel(y_ref, gamma_ref, beta_ref, o_ref, *, inv_n: float):
    # y_ref: (TR, N) row tile; gamma_ref / beta_ref: (1, N).
    yf = y_ref[...].astype(jnp.float32)

    # Two-pass statistics on the resident tile (matches torch.var numerics).
    mean = jnp.sum(yf, axis=-1, keepdims=True) * inv_n          # (TR, 1)
    centered = yf - mean                                         # (TR, N)
    var = jnp.sum(centered * centered, axis=-1, keepdims=True) * inv_n
    inv_std = jax.lax.rsqrt(var + EPS)                           # (TR, 1) — EUP

    gamma = gamma_ref[...].astype(jnp.float32)                   # (1, N)
    beta = beta_ref[...].astype(jnp.float32)                     # (1, N)

    # Fold gamma into the per-row scale; single mul + add over the tile.
    scale = gamma * inv_std                                      # (TR, N)
    o_ref[...] = (centered * scale + beta).astype(o_ref.dtype)


def _choose_tr(R: int, N: int, itemsize: int):
    """Pick a row-tile TR and a VMEM limit, generation-aware.

    Returns (TR, vmem_limit_bytes). TR is a multiple of 32 (safe sublane
    multiple across f32/bf16/int8) unless it covers all R rows.
    """
    try:
        vmem_cap = pltpu.get_tpu_info().vmem_capacity_bytes
    except Exception:  # pragma: no cover — fall back to a conservative budget
        vmem_cap = 64 << 20

    if vmem_cap >= (96 << 20):
        # v5e / v6e: 128 MiB physical VMEM — big blocks, generous scoped limit.
        target_block = 4 << 20
        vmem_limit = 64 << 20
    else:
        # v7x: only 64 MiB physical VMEM — keep 2x in + 2x out double buffers
        # plus in-kernel f32 temporaries well under budget.
        target_block = 2 << 20
        vmem_limit = 40 << 20

    tr = (target_block // max(1, N * itemsize)) // 32 * 32
    tr = int(max(32, min(tr, 16384)))

    # v7x megacore: make sure there are at least 2 "parallel" grid steps when
    # there is enough work to split (harmless on single-TC v5e/v6e).
    if R > 64:
        half = ((R + 1) // 2 + 31) // 32 * 32
        tr = min(tr, max(32, half))

    if tr >= R:
        tr = R  # full-extent block — always legal
    return tr, vmem_limit


def cln_forward(y: jax.Array, gamma: jax.Array, beta: jax.Array) -> jax.Array:
    """Channel-wise LayerNorm. y: [M, K, N]; gamma, beta: [1, 1, N]."""
    M, K, N = y.shape
    assert gamma.shape == (1, 1, N) and beta.shape == (1, 1, N)

    R = M * K
    y2 = y.reshape(R, N)          # free: rows are contiguous
    g2 = gamma.reshape(1, N)
    b2 = beta.reshape(1, N)

    tr, vmem_limit = _choose_tr(R, N, jnp.dtype(y.dtype).itemsize)
    grid = (pl.cdiv(R, tr),)

    kernel = functools.partial(_cln_kernel, inv_n=1.0 / N)

    out = pl.pallas_call(
        kernel,
        out_shape=jax.ShapeDtypeStruct((R, N), y.dtype),
        grid=grid,
        in_specs=[
            pl.BlockSpec((tr, N), lambda r: (r, 0)),
            pl.BlockSpec((1, N), lambda r: (0, 0)),
            pl.BlockSpec((1, N), lambda r: (0, 0)),
        ],
        out_specs=pl.BlockSpec((tr, N), lambda r: (r, 0)),
        compiler_params=pltpu.CompilerParams(
            dimension_semantics=("parallel",),
            vmem_limit_bytes=vmem_limit,
        ),
    )(y2, g2, b2)

    return out.reshape(M, K, N)


def cln_reference(y, gamma, beta):
    mean = jnp.mean(y, axis=2, keepdims=True)
    var = jnp.var(y, axis=2, keepdims=True)  # biased, matches unbiased=False
    return gamma * (y - mean) / jnp.sqrt(var + EPS) + beta


if __name__ == "__main__":
    # Small shapes consistent with the module: [M, K, N] = [batch, length, channels].
    # N=32 exercises the N % 128 != 0 (masked-store, no-padding) path.
    M, K, N = 2, 16, 32

    key = jax.random.PRNGKey(0)
    y = jax.random.normal(key, (M, K, N), dtype=jnp.float32)

    # reset_parameters(): gamma=1, beta=0
    gamma = jnp.ones((1, 1, N), dtype=jnp.float32)
    beta = jnp.zeros((1, 1, N), dtype=jnp.float32)

    out = jax.block_until_ready(cln_forward(y, gamma, beta))
    ref = cln_reference(y, gamma, beta)

    assert out.shape == (M, K, N)
    assert jnp.allclose(out, ref, atol=1e-5, rtol=1e-5), "mismatch vs reference"

    print("KERNEL_OK")
</pallas_src>

<mosaic_0001>
module attributes {stable_mosaic.version = 11 : i64} {
  func.func @_cln_kernel(%arg0: i32, %arg1: memref<32x32xf32, #tpu.memory_space<vmem>>, %arg2: memref<1x32xf32, #tpu.memory_space<vmem>>, %arg3: memref<1x32xf32, #tpu.memory_space<vmem>>, %arg4: memref<32x32xf32, #tpu.memory_space<vmem>>) attributes {dimension_semantics = [#tpu.dimension_semantics<parallel>], iteration_bounds = array<i64: 1>, scalar_prefetch = 0 : i64, scratch_operands = 0 : i64, tpu.core_type = #tpu.core_type<tc>, window_params = [{transform_indices = @transform_0, window_bounds = array<i64: 32, 32>}, {pipeline_mode = #tpu.pipeline_mode<synchronous>, transform_indices = @transform_1, window_bounds = array<i64: 1, 32>}, {pipeline_mode = #tpu.pipeline_mode<synchronous>, transform_indices = @transform_2, window_bounds = array<i64: 1, 32>}, {transform_indices = @transform_3, window_bounds = array<i64: 32, 32>}]} {
    %c0 = arith.constant 0 : index
    %c0_0 = arith.constant 0 : index
    %0 = vector.load %arg1[%c0, %c0_0] : memref<32x32xf32, #tpu.memory_space<vmem>>, vector<32x32xf32>
    %cst = arith.constant dense<0.000000e+00> : vector<32xf32>
    %1 = vector.multi_reduction <add>, %0, %cst [1] : vector<32x32xf32> to vector<32xf32>
    %2 = vector.shape_cast %1 : vector<32xf32> to vector<32x1xf32>
    %cst_1 = arith.constant 3.125000e-02 : f32
    %3 = vector.broadcast %cst_1 : f32 to vector<32x1xf32>
    %4 = arith.mulf %2, %3 : vector<32x1xf32>
    %5 = vector.broadcast %4 : vector<32x1xf32> to vector<32x32xf32>
    %6 = arith.subf %0, %5 : vector<32x32xf32>
    %7 = arith.mulf %6, %6 : vector<32x32xf32>
    %cst_2 = arith.constant dense<0.000000e+00> : vector<32xf32>
    %8 = vector.multi_reduction <add>, %7, %cst_2 [1] : vector<32x32xf32> to vector<32xf32>
    %9 = vector.shape_cast %8 : vector<32xf32> to vector<32x1xf32>
    %cst_3 = arith.constant 3.125000e-02 : f32
    %10 = vector.broadcast %cst_3 : f32 to vector<32x1xf32>
    %11 = arith.mulf %9, %10 : vector<32x1xf32>
    %cst_4 = arith.constant 9.99999971E-10 : f32
    %12 = vector.broadcast %cst_4 : f32 to vector<32x1xf32>
    %13 = arith.addf %11, %12 : vector<32x1xf32>
    %14 = math.rsqrt %13 : vector<32x1xf32>
    %c0_5 = arith.constant 0 : index
    %c0_6 = arith.constant 0 : index
    %15 = vector.load %arg2[%c0_5, %c0_6] : memref<1x32xf32, #tpu.memory_space<vmem>>, vector<1x32xf32>
    %c0_7 = arith.constant 0 : index
    %c0_8 = arith.constant 0 : index
    %16 = vector.load %arg3[%c0_7, %c0_8] : memref<1x32xf32, #tpu.memory_space<vmem>>, vector<1x32xf32>
    %17 = vector.broadcast %15 : vector<1x32xf32> to vector<32x32xf32>
    %18 = vector.broadcast %14 : vector<32x1xf32> to vector<32x32xf32>
    %19 = arith.mulf %17, %18 : vector<32x32xf32>
    %20 = arith.mulf %6, %19 : vector<32x32xf32>
    %21 = vector.broadcast %16 : vector<1x32xf32> to vector<32x32xf32>
    %22 = arith.addf %20, %21 : vector<32x32xf32>
    %c0_9 = arith.constant 0 : index
    %c0_10 = arith.constant 0 : index
    %23 = vector.load %arg4[%c0_9, %c0_10] : memref<32x32xf32, #tpu.memory_space<vmem>>, vector<32x32xf32>
    tpu.vector_store %arg4[%c0_9, %c0_10], %22 {strides = array<i32>} : memref<32x32xf32, #tpu.memory_space<vmem>>, vector<32x32xf32>,
    return
  }
  func.func @transform_0(%arg0: i32) -> (i32, i32) {
    %c0_i32 = arith.constant 0 : i32
    %c0_i32_0 = arith.constant 0 : i32
    return %arg0, %c0_i32 : i32, i32
  }
  func.func @transform_1(%arg0: i32) -> (i32, i32) {
    %c0_i32 = arith.constant 0 : i32
    %c0_i32_0 = arith.constant 0 : i32
    %c0_i32_1 = arith.constant 0 : i32
    return %c0_i32, %c0_i32_0 : i32, i32
  }
  func.func @transform_2(%arg0: i32) -> (i32, i32) {
    %c0_i32 = arith.constant 0 : i32
    %c0_i32_0 = arith.constant 0 : i32
    %c0_i32_1 = arith.constant 0 : i32
    return %c0_i32, %c0_i32_0 : i32, i32
  }
  func.func @transform_3(%arg0: i32) -> (i32, i32) {
    %c0_i32 = arith.constant 0 : i32
    %c0_i32_0 = arith.constant 0 : i32
    return %arg0, %c0_i32 : i32, i32
  }
}

</mosaic_0001>

<llo_original>
// kernel: tpu_custom_call.1
$region0: #{tpu_custom_call.1}
  #allocation0 [shape = 'u32[]', space=smem, size = 0x4, offset = 0x4, fixed_abs, tag = 'smem constant byte address 0x4 - core index']
  #allocation1 [shape = 'u32[144,128]{1,0:T(1,128)}', space=vmem, size = 0x12000, scoped, tag = 'internal scratch']
  %s0 = inlined_call_operand.hbm [shape: f32[32,32], index: 0, kind: input, shape index: {}]
  %s1 = inlined_call_operand.vmem [shape: f32[1,32], index: 1, kind: input, shape index: {}]
  %s2 = inlined_call_operand.vmem [shape: f32[1,32], index: 2, kind: input, shape index: {}]
  %s3 = inlined_call_operand.hbm [shape: f32[32,32], index: 3, kind: output, shape index: {}]
  %s4 = sld [smem:[#allocation0]]
  $region26: #{tpu_custom_call.1} parent=0
    _
  %s6 = ssub.s32 1, %s4
  %s7 = scalar_select 0, %s6, %s4
  $region1: #{tpu_custom_call.1} parent=0
    #allocation2 [shape = 'u8[16384]{0}', space=vmem, size = 0x4000, scoped, tag = 'input window, operand 0, single buffered']
    #allocation3 [shape = 's32[1]{0}', space=sflag, size = 0x4, scoped, tag = 'scoped memory for tpu_custom_call.1']
    #allocation4 [shape = 's32[1]{0}', space=sflag, size = 0x4, scoped, tag = 'scoped memory for tpu_custom_call.1']
    #allocation5 [shape = 'u8[16384]{0}', space=vmem, size = 0x4000, scoped, tag = 'output window, operand 0, single buffered']
    %8 = vsyncpa [#allocation3], 0
    %9 = vsyncpa [#allocation4], 0
    // Predicated region
    $region2: #{tpu_custom_call.1} parent=1 // pred_check
      _
    $region3: #{tpu_custom_call.1} parent=1 // pred_check_branch
      %11 = sbr.rel (0) target = $region5
    $region4: #{tpu_custom_call.1} parent=1 // pred_region
      %s13 = ssub.s32 512, 512
      %14 = vsyncadd [#allocation3], %s13
      %s15 = sshll.u32 [#allocation2], 4
      %s16 = int_to_ptr.vmem [resolvable:$true] %s15
      %21 = dma.hbm_to_vmem [thread:$0]  %s0, 512, %s16, [#allocation3], 128, 128, 8
    $region5: #{tpu_custom_call.1} parent=1 // pred_fallthru
      _
    // Predicated region
    $region6: #{tpu_custom_call.1} parent=1 // pred_check
      _
    $region7: #{tpu_custom_call.1} parent=1 // pred_check_branch
      %23 = sbr.rel (0) target = $region9
    $region8: #{tpu_custom_call.1} parent=1 // pred_region
      _
    $region9: #{tpu_custom_call.1} parent=1 // pred_fallthru
      _
    // Predicated region
    $region10: #{tpu_custom_call.1} parent=1 // pred_check
      _
    $region11: #{tpu_custom_call.1} parent=1 // pred_check_branch
      %25 = sbr.rel (0) target = $region13
    $region12: #{tpu_custom_call.1} parent=1 // pred_region
      _
    $region13: #{tpu_custom_call.1} parent=1 // pred_fallthru
      _
    // Predicated region
    $region14: #{tpu_custom_call.1} parent=1 // pred_check
      _
    $region15: #{tpu_custom_call.1} parent=1 // pred_check_branch
      %27 = sbr.rel (0) target = $region17
    $region16: #{tpu_custom_call.1} parent=1 // pred_region
      %28 = dma.done [#allocation3], 512
    $region17: #{tpu_custom_call.1} parent=1 // pred_fallthru
      _
    %v29 = vld [vmem:[#allocation2] sm:$0xff]
    %v30 = vld [vmem:[#allocation2 + $0x8] sm:$0xff]
    %v31 = vld [vmem:[#allocation2 + $0x10] sm:$0xff]
    %v32 = vld [vmem:[#allocation2 + $0x18] sm:$0xff]
    %vm33 = vcmask 261120
    %v34 = vsel %vm33, %v29, 0.0
    %35 = vadd.xlane.f32.xlu0 %v34
    %v36 = vpop.xlane.xlu0 %35
    %v37 = vsel %vm33, %v30, 0.0
    %38 = vadd.xlane.f32.xlu0 %v37
    %v39 = vpop.xlane.xlu0 %38
    %v40 = vsel %vm33, %v31, 0.0
    %41 = vadd.xlane.f32.xlu0 %v40
    %v42 = vpop.xlane.xlu0 %41
    %v43 = vsel %vm33, %v32, 0.0
    %44 = vadd.xlane.f32.xlu0 %v43
    %v45 = vpop.xlane.xlu0 %44
    %v46 = vmul.f32 %v36, 0.03125
    %v47 = vmul.f32 %v39, 0.03125
    %v48 = vmul.f32 %v42, 0.03125
    %v49 = vmul.f32 %v45, 0.03125
    %v50 = vsub.f32 %v29, %v46
    %v51 = vsub.f32 %v30, %v47
    %v52 = vsub.f32 %v31, %v48
    %v53 = vsub.f32 %v32, %v49
    %v54 = vmul.f32 %v50, %v50
    %v55 = vmul.f32 %v51, %v51
    %v56 = vmul.f32 %v52, %v52
    %v57 = vmul.f32 %v53, %v53
    %v58 = vsel %vm33, %v54, 0.0
    %59 = vadd.xlane.f32.xlu0 %v58
    %v60 = vpop.xlane.xlu0 %59
    %v61 = vsel %vm33, %v55, 0.0
    %62 = vadd.xlane.f32.xlu0 %v61
    %v63 = vpop.xlane.xlu0 %62
    %v64 = vsel %vm33, %v56, 0.0
    %65 = vadd.xlane.f32.xlu0 %v64
    %v66 = vpop.xlane.xlu0 %65
    %v67 = vsel %vm33, %v57, 0.0
    %68 = vadd.xlane.f32.xlu0 %v67
    %v69 = vpop.xlane.xlu0 %68
    %v70 = vmul.f32 %v60, 0.03125
    %v71 = vmul.f32 %v63, 0.03125
    %v72 = vmul.f32 %v66, 0.03125
    %v73 = vmul.f32 %v69, 0.03125
    %v74 = vadd.f32 %v70, 1e-09
    %v75 = vadd.f32 %v71, 1e-09
    %v76 = vadd.f32 %v72, 1e-09
    %v77 = vadd.f32 %v73, 1e-09
    %v78 = vrsqrt.pop %v74
    %v79 = vrsqrt.pop %v75
    %v80 = vrsqrt.pop %v76
    %v81 = vrsqrt.pop %v77
    %v82 = vld [vmem:[%s1] sm:$0x1]
    %v83 = vld [vmem:[%s2] sm:$0x1]
    %v85 = vlaneseq
    %v86 = vshrl.u32 %v85, 7
    %v87 = vsub.s32 0, %v86
    %v88 = vrot.slane %v82, %v87
    %v90 = vmul.f32 %v88, %v78
    %v91 = vmul.f32 %v88, %v79
    %v92 = vmul.f32 %v88, %v80
    %v93 = vmul.f32 %v88, %v81
    %v94 = vmul.f32 %v50, %v90
    %v95 = vmul.f32 %v51, %v91
    %v96 = vmul.f32 %v52, %v92
    %v97 = vmul.f32 %v53, %v93
    %v99 = vlaneseq
    %v100 = vshrl.u32 %v99, 7
    %v101 = vsub.s32 0, %v100
    %v102 = vrot.slane %v83, %v101
    %v104 = vadd.f32 %v94, %v102
    %v105 = vadd.f32 %v95, %v102
    %v106 = vadd.f32 %v96, %v102
    %v107 = vadd.f32 %v97, %v102
    %108 = vst.msk [vmem:[#allocation5] sm:$0xff] %vm33, %v104
    %109 = vst.msk [vmem:[#allocation5 + $0x8] sm:$0xff] %vm33, %v105
    %110 = vst.msk [vmem:[#allocation5 + $0x10] sm:$0xff] %vm33, %v106
    %111 = vst.msk [vmem:[#allocation5 + $0x18] sm:$0xff] %vm33, %v107
    // Predicated region
    $region18: #{tpu_custom_call.1} parent=1 // pred_check
      _
    $region19: #{tpu_custom_call.1} parent=1 // pred_check_branch
      %113 = sbr.rel (0) target = $region21
    $region20: #{tpu_custom_call.1} parent=1 // pred_region
      %s115 = ssub.s32 512, 512
      %116 = vsyncadd [#allocation4], %s115
      %s117 = sshll.u32 [#allocation5], 4
      %s118 = int_to_ptr.vmem [resolvable:$true] %s117
      %123 = dma.vmem_to_hbm [thread:$0]  %s118, 512, %s3, [#allocation4], 128, 128, 8
    $region21: #{tpu_custom_call.1} parent=1 // pred_fallthru
      _
    // Predicated region
    $region22: #{tpu_custom_call.1} parent=1 // pred_check
      _
    $region23: #{tpu_custom_call.1} parent=1 // pred_check_branch
      %125 = sbr.rel (0) target = $region25
    $region24: #{tpu_custom_call.1} parent=1 // pred_region
      %126 = dma.done [#allocation4], 512
    $region25: #{tpu_custom_call.1} parent=1 // pred_fallthru
      _
    %127 = vsyncpa [#allocation3], 1
    %128 = vsyncpa [#allocation4], 1

</llo_original>
